<compile_context>
chip_gen: v5e
topology: v5e:2x2
jax: 0.10.0
libtpu: 0.0.40
codegen_flags: <defaults>
</compile_context>

<pallas_src>
import functools

import jax
import jax.numpy as jnp
from jax.experimental import pallas as pl
from jax.experimental.pallas import tpu as pltpu

LANES = 128
SUBLANES = 8
_BLOCK_BYTES = 4 * 1024 * 1024      # per input, per pipeline buffer
_VMEM_LIMIT = 32 * 1024 * 1024      # 2 inputs x 2 buffers x 4 MiB = 16 MiB used


def _round_up(x: int, m: int) -> int:
    return ((x + m - 1) // m) * m


def _round_down(x: int, m: int) -> int:
    return (x // m) * m


def _detect_num_splits() -> int:
    """TensorCores per chip (2 on v7x, 1 on v5e/v6e); defensive fallback."""
    try:
        info = pltpu.get_tpu_info()
        for attr in ("num_tensorcores", "tensorcore_count", "num_cores",
                     "core_count", "num_cores_per_chip"):
            n = getattr(info, attr, None)
            if n:
                return max(1, min(2, int(n)))
    except Exception:
        pass
    return 2   # correct for v7x; negligible overhead on single-TC chips


DEFAULT_NUM_SPLITS = _detect_num_splits()


def _make_kernel(alpha: float, rows_valid: int, block_rows: int, steps: int,
                 masked: bool):
    inv_eps = 1.0 / (alpha + 1e-4)
    n_sub = block_rows // SUBLANES

    def kernel(pred_ref, true_ref, out_ref):
        step = pl.program_id(1)

        @pl.when(step == 0)
        def _():
            out_ref[...] = jnp.zeros_like(out_ref)

        x = pred_ref[...].astype(jnp.float32)
        y = true_ref[...].astype(jnp.float32)

        # BCEWithLogitsLoss(reduction='none'), numerically stable form:
        #   bce = max(x, 0) - x*y + log(1 + exp(-|x|))
        # e and d = 1 + e are shared with the sigmoid below.
        e = jnp.exp(-jnp.abs(x))
        d = 1.0 + e
        bce = jnp.maximum(x, 0.0) - x * y + jnp.log(d)

        # sigmoid(x) == where(x>=0, 1, e) / (1+e).  Exact reciprocal: the
        # ~2^-12 error of pl.reciprocal(approx=True) would be amplified by
        # inv_eps (~20) inside the exp below, breaking 1e-5 accuracy.
        p = jnp.where(x >= 0.0, 1.0, e) / d
        alpha_factor = 1.0 - jnp.exp((p - y - 1.0) * inv_eps)
        loss = bce * alpha_factor

        def block_sum(v):
            # Lane/sublane-parallel partial sum; the single cross-lane reduce
            # happens once in the wrapper on the tiny (8,128) partials.
            return jnp.sum(v.reshape(n_sub, SUBLANES, LANES), axis=0)

        if masked:  # static: row space is ragged w.r.t. the block grid
            blk = pl.program_id(0) * steps + step
            rem = rows_valid - blk * block_rows   # valid rows in this block

            @pl.when(rem >= block_rows)           # full block: no mask work
            def _():
                out_ref[...] += block_sum(loss)

            @pl.when(rem < block_rows)            # partial (last) block only
            def _():
                row = jax.lax.broadcasted_iota(jnp.int32, loss.shape, 0)
                out_ref[...] += block_sum(jnp.where(row < rem, loss, 0.0))
        else:
            out_ref[...] += block_sum(loss)

    return kernel


def _blur_loss_elems(x, y, alpha):
    """Pure-jnp elementwise BCEBlur loss (only used for the <128-elem tail)."""
    x = x.astype(jnp.float32)
    y = y.astype(jnp.float32)
    bce = jnp.maximum(x, 0.0) - x * y + jnp.log1p(jnp.exp(-jnp.abs(x)))
    p = jax.nn.sigmoid(x)
    return bce * (1.0 - jnp.exp((p - y - 1.0) / (alpha + 1e-4)))


@functools.partial(jax.jit, static_argnames=("alpha", "block_rows", "num_splits"))
def bce_blur_with_logits_loss(pred, true, alpha=0.05,
                              block_rows=None, num_splits=None):
    """Scalar mean loss, matching BCEBlurWithLogitsLoss.forward."""
    assert pred.shape == true.shape
    n_valid = pred.size
    assert n_valid > 0

    if num_splits is None:
        num_splits = DEFAULT_NUM_SPLITS

    # Native-dtype flatten; the kernel upcasts per block.
    p_flat = jnp.ravel(pred)
    t_flat = jnp.ravel(true)

    rows_valid = n_valid // LANES          # full 128-lane rows via the kernel
    tail = n_valid - rows_valid * LANES    # <128 leftover elems: wrapper-side

    if tail:
        tail_sum = jnp.sum(_blur_loss_elems(p_flat[rows_valid * LANES:],
                                            t_flat[rows_valid * LANES:],
                                            alpha))
    else:
        tail_sum = jnp.float32(0.0)

    if rows_valid == 0:  # tiny tensor: everything handled by the tail path
        return tail_sum / n_valid

    # Sublane packing of the second-minor block dim depends on the narrowest
    # input dtype: 8 rows (4B), 16 rows (2B), 32 rows (1B).
    itemsizes = (p_flat.dtype.itemsize, t_flat.dtype.itemsize)
    pack = SUBLANES * (4 // min(itemsizes))

    if rows_valid < num_splits * pack:
        num_splits = 1

    if block_rows is None:
        block_rows = max(pack, _round_down(_BLOCK_BYTES // (LANES * max(itemsizes)),
                                           pack))

    per_split = pl.cdiv(rows_valid, num_splits)
    steps = pl.cdiv(per_split, block_rows)
    block_rows = _round_up(pl.cdiv(per_split, steps), pack)
    masked = (num_splits * steps * block_rows) != rows_valid

    if tail:
        # Ragged size: a single copy of (almost) the whole tensor is
        # unavoidable; a zero-offset slice writes fewer bytes than jnp.pad.
        p2 = jax.lax.slice(p_flat, (0,), (rows_valid * LANES,))
        t2 = jax.lax.slice(t_flat, (0,), (rows_valid * LANES,))
    else:
        p2, t2 = p_flat, t_flat            # free reshape below, no copy
    p2 = p2.reshape(rows_valid, LANES)
    t2 = t2.reshape(rows_valid, LANES)

    in_spec = pl.BlockSpec((block_rows, LANES), lambda c, i: (c * steps + i, 0))
    out_spec = pl.BlockSpec((SUBLANES, LANES), lambda c, i: (c, 0))

    cost = pl.CostEstimate(
        flops=12 * rows_valid * LANES,
        transcendentals=4 * rows_valid * LANES,
        bytes_accessed=rows_valid * LANES * (p2.dtype.itemsize + t2.dtype.itemsize)
        + num_splits * SUBLANES * LANES * 4,
    )

    partials = pl.pallas_call(
        _make_kernel(float(alpha), rows_valid, block_rows, steps, masked),
        out_shape=jax.ShapeDtypeStruct((num_splits * SUBLANES, LANES),
                                       jnp.float32),
        grid_spec=pltpu.PrefetchScalarGridSpec(
            num_scalar_prefetch=0,
            grid=(num_splits, steps),
            in_specs=[in_spec, in_spec],
            out_specs=out_spec,
        ),
        compiler_params=pltpu.CompilerParams(
            dimension_semantics=("parallel", "arbitrary"),
            vmem_limit_bytes=_VMEM_LIMIT),
        cost_estimate=cost,
    )(p2, t2)

    return (jnp.sum(partials) + tail_sum) / n_valid


def _reference(pred, true, alpha=0.05):
    x = pred.astype(jnp.float32)
    y = true.astype(jnp.float32)
    bce = jnp.maximum(x, 0.0) - x * y + jnp.log1p(jnp.exp(-jnp.abs(x)))
    p = jax.nn.sigmoid(x)
    af = 1.0 - jnp.exp((p - y - 1.0) / (alpha + 1e-4))
    return jnp.mean(bce * af)


if __name__ == "__main__":
    key = jax.random.PRNGKey(0)
    k1, k2, k3, k4, k5, k6 = jax.random.split(key, 6)

    # NCHW objectness-style map; 2048 elements -> 16 full 128-lane rows.
    pred = jax.random.normal(k1, (2, 4, 16, 16), dtype=jnp.float32)
    true = (jax.random.uniform(k2, (2, 4, 16, 16)) > 0.5).astype(jnp.float32)
    out = jax.block_until_ready(bce_blur_with_logits_loss(pred, true, alpha=0.05))
    ref = _reference(pred, true, alpha=0.05)
    assert jnp.allclose(out, ref, rtol=1e-5, atol=1e-6), (out, ref)

    # Ragged size (945 elems): 7 rows via the kernel (partial-block mask)
    # plus a 49-element tail summed in the wrapper.  No whole-tensor pad.
    pred2 = jax.random.normal(k3, (3, 5, 7, 9), dtype=jnp.float32)
    true2 = (jax.random.uniform(k4, (3, 5, 7, 9)) > 0.5).astype(jnp.float32)
    out2 = jax.block_until_ready(bce_blur_with_logits_loss(pred2, true2, alpha=0.05))
    ref2 = _reference(pred2, true2, alpha=0.05)
    assert jnp.allclose(out2, ref2, rtol=1e-5, atol=1e-6), (out2, ref2)

    # bf16 logits (native-dtype path, 16-row sublane packing), f32 targets.
    pred3 = jax.random.normal(k5, (2, 3, 20, 20), dtype=jnp.bfloat16)
    true3 = (jax.random.uniform(k6, (2, 3, 20, 20)) > 0.5).astype(jnp.float32)
    out3 = jax.block_until_ready(bce_blur_with_logits_loss(pred3, true3, alpha=0.05))
    ref3 = _reference(pred3, true3, alpha=0.05)
    assert jnp.allclose(out3, ref3, rtol=1e-4, atol=1e-6), (out3, ref3)

    print("KERNEL_OK")
</pallas_src>

<mosaic_0001>
module attributes {stable_mosaic.version = 11 : i64} {
  func.func @kernel(%arg0: i32, %arg1: i32, %arg2: memref<8x128xf32, #tpu.memory_space<vmem>>, %arg3: memref<8x128xf32, #tpu.memory_space<vmem>>, %arg4: memref<8x128xf32, #tpu.memory_space<vmem>>) attributes {dimension_semantics = [#tpu.dimension_semantics<parallel>, #tpu.dimension_semantics<arbitrary>], iteration_bounds = array<i64: 2, 1>, scalar_prefetch = 0 : i64, scratch_operands = 0 : i64, tpu.core_type = #tpu.core_type<tc>, window_params = [{transform_indices = @transform_0, window_bounds = array<i64: 8, 128>}, {transform_indices = @transform_1, window_bounds = array<i64: 8, 128>}, {transform_indices = @transform_2, window_bounds = array<i64: 8, 128>}]} {
    %c0_i32 = arith.constant 0 : i32
    %0 = arith.cmpi eq, %arg1, %c0_i32 : i32
    %1 = arith.extui %0 : i1 to i32
    %c0_i32_0 = arith.constant 0 : i32
    %2 = arith.cmpi ne, %1, %c0_i32_0 : i32
    scf.if %2 {
      %cst_16 = arith.constant 0.000000e+00 : f32
      %36 = vector.broadcast %cst_16 : f32 to vector<8x128xf32>
      %c0_17 = arith.constant 0 : index
      %c0_18 = arith.constant 0 : index
      %37 = vector.load %arg4[%c0_17, %c0_18] : memref<8x128xf32, #tpu.memory_space<vmem>>, vector<8x128xf32>
      tpu.vector_store %arg4[%c0_17, %c0_18], %36 {strides = array<i32>} : memref<8x128xf32, #tpu.memory_space<vmem>>, vector<8x128xf32>,
    } else {
    }
    %c0 = arith.constant 0 : index
    %c0_1 = arith.constant 0 : index
    %3 = vector.load %arg2[%c0, %c0_1] : memref<8x128xf32, #tpu.memory_space<vmem>>, vector<8x128xf32>
    %c0_2 = arith.constant 0 : index
    %c0_3 = arith.constant 0 : index
    %4 = vector.load %arg3[%c0_2, %c0_3] : memref<8x128xf32, #tpu.memory_space<vmem>>, vector<8x128xf32>
    %5 = math.absf %3 : vector<8x128xf32>
    %cst = arith.constant 0.000000e+00 : f32
    %6 = vector.broadcast %cst : f32 to vector<8x128xf32>
    %7 = arith.subf %6, %5 : vector<8x128xf32>
    %8 = math.exp %7 : vector<8x128xf32>
    %cst_4 = arith.constant 1.000000e+00 : f32
    %9 = vector.broadcast %cst_4 : f32 to vector<8x128xf32>
    %10 = arith.addf %9, %8 : vector<8x128xf32>
    %cst_5 = arith.constant 0.000000e+00 : f32
    %11 = vector.broadcast %cst_5 : f32 to vector<8x128xf32>
    %12 = arith.maximumf %3, %11 : vector<8x128xf32>
    %13 = arith.mulf %3, %4 : vector<8x128xf32>
    %14 = arith.subf %12, %13 : vector<8x128xf32>
    %15 = math.log %10 : vector<8x128xf32>
    %16 = arith.addf %14, %15 : vector<8x128xf32>
    %cst_6 = arith.constant 0.000000e+00 : f32
    %17 = vector.broadcast %cst_6 : f32 to vector<8x128xf32>
    %18 = arith.cmpf oge, %3, %17 : vector<8x128xf32>
    %cst_7 = arith.constant 1.000000e+00 : f32
    %19 = vector.broadcast %cst_7 : f32 to vector<8x128xf32>
    %20 = arith.select %18, %19, %8 : vector<8x128xi1>, vector<8x128xf32>
    %21 = arith.divf %20, %10 : vector<8x128xf32>
    %22 = arith.subf %21, %4 : vector<8x128xf32>
    %cst_8 = arith.constant 1.000000e+00 : f32
    %23 = vector.broadcast %cst_8 : f32 to vector<8x128xf32>
    %24 = arith.subf %22, %23 : vector<8x128xf32>
    %cst_9 = arith.constant 19.9600792 : f32
    %25 = vector.broadcast %cst_9 : f32 to vector<8x128xf32>
    %26 = arith.mulf %24, %25 : vector<8x128xf32>
    %27 = math.exp %26 : vector<8x128xf32>
    %cst_10 = arith.constant 1.000000e+00 : f32
    %28 = vector.broadcast %cst_10 : f32 to vector<8x128xf32>
    %29 = arith.subf %28, %27 : vector<8x128xf32>
    %30 = arith.mulf %16, %29 : vector<8x128xf32>
    %c0_11 = arith.constant 0 : index
    %c0_12 = arith.constant 0 : index
    %31 = vector.load %arg4[%c0_11, %c0_12] : memref<8x128xf32, #tpu.memory_space<vmem>>, vector<8x128xf32>
    %32 = vector.shape_cast %30 : vector<8x128xf32> to vector<1x8x128xf32>
    %cst_13 = arith.constant dense<0.000000e+00> : vector<8x128xf32>
    %33 = vector.multi_reduction <add>, %32, %cst_13 [0] : vector<1x8x128xf32> to vector<8x128xf32>
    %34 = arith.addf %31, %33 : vector<8x128xf32>
    %c0_14 = arith.constant 0 : index
    %c0_15 = arith.constant 0 : index
    %35 = vector.load %arg4[%c0_14, %c0_15] : memref<8x128xf32, #tpu.memory_space<vmem>>, vector<8x128xf32>
    tpu.vector_store %arg4[%c0_14, %c0_15], %34 {strides = array<i32>} : memref<8x128xf32, #tpu.memory_space<vmem>>, vector<8x128xf32>,
    return
  }
  func.func @transform_0(%arg0: i32, %arg1: i32) -> (i32, i32) {
    %c1_i32 = arith.constant 1 : i32
    %0 = arith.muli %arg0, %c1_i32 : i32
    %1 = arith.addi %0, %arg1 : i32
    %c0_i32 = arith.constant 0 : i32
    %c0_i32_0 = arith.constant 0 : i32
    return %1, %c0_i32 : i32, i32
  }
  func.func @transform_1(%arg0: i32, %arg1: i32) -> (i32, i32) {
    %c1_i32 = arith.constant 1 : i32
    %0 = arith.muli %arg0, %c1_i32 : i32
    %1 = arith.addi %0, %arg1 : i32
    %c0_i32 = arith.constant 0 : i32
    %c0_i32_0 = arith.constant 0 : i32
    return %1, %c0_i32 : i32, i32
  }
  func.func @transform_2(%arg0: i32, %arg1: i32) -> (i32, i32) {
    %c0_i32 = arith.constant 0 : i32
    %c0_i32_0 = arith.constant 0 : i32
    return %arg0, %c0_i32 : i32, i32
  }
}

</mosaic_0001>

<llo_original>
// kernel: bce_blur_with_logits_loss.1
$region0: #{bce_blur_with_logits_loss.1}
  #allocation0 [shape = 'u32[]', space=smem, size = 0x4, offset = 0x4, fixed_abs, tag = 'smem constant byte address 0x4 - core index']
  #allocation1 [shape = 'u32[72,128]{1,0:T(1,128)}', space=vmem, size = 0x9000, scoped, tag = 'internal scratch']
  %s0 = inlined_call_operand.vmem [shape: f32[16,128], index: 0, kind: input, shape index: {}]
  %s1 = inlined_call_operand.vmem [shape: f32[16,128], index: 1, kind: input, shape index: {}]
  %s2 = inlined_call_operand.vmem [shape: f32[16,128], index: 2, kind: output, shape index: {}]
  %s3 = sld [smem:[#allocation0]]
  $region45: #{bce_blur_with_logits_loss.1} parent=0
    _
  %s5 = ssub.s32 1, %s3
  %s6 = scalar_select 0, %s5, %s3
  loop: start=0, step=1, limit=4
  $region2: #{bce_blur_with_logits_loss.1} parent=0 // loop_pre_header
    _
  $region3: #{bce_blur_with_logits_loss.1} parent=0 // loop_header
    %s8 = sphi 0, %s12
    %p9 = scmp.ge.s32.totalorder %s8, 4
    %s15 = sphi 0, %s27
    %s16 = sphi 0, %s23
    %s17 = sphi 0, %s15
    %s18 = sphi 0, %s16
    %s19 = sphi 0, %s17
    %s20 = sphi 0, %s18
    %s32 = sphi 0, %s34
    %s35 = sphi 0, %s32
    %s36 = sphi 0, %s35
    %s52 = sphi 0, %s36
    %s60 = sphi 0, %s62
    %s63 = sphi 0, %s60
    %s64 = sphi 0, %s63
    %s80 = sphi 0, %s64
    %s86 = sphi 0, %s88
    %s89 = sphi 0, %s86
    %s90 = sphi 0, %s89
    %s106 = sphi 0, %s90
  $region4: #{bce_blur_with_logits_loss.1} parent=0 // loop_header_branch
    %11 = sbr.rel (%p9) target = $region8
  $region5: #{bce_blur_with_logits_loss.1} parent=0 // loop_body
    %s13 = ssub.s32 %s8, 1
    %s14 = ssub.s32 %s8, 2
    %s21 = sadd.s32 1, %s16
    %p22 = scmp.ge.s32.totalorder %s21, 1
    %s23 = scalar_select %p22, 0, %s21
    %s24 = sadd.s32 1, %s15
    %s25 = scalar_select %p22, %s24, %s15
    %p26 = scmp.ge.s32.totalorder %s25, 2
    %s27 = scalar_select %p26, 0, %s25
    %s28 = sadd.s32 %s15, %s16
    %s29 = sadd.s32 %s27, %s23
    %s30 = ssub.s32 %s28, %s29
    %p31 = scmp.eq.s32.totalorder %s30, 0
    %s33 = sadd.s32 %s32, 1
    %s34 = scalar_select %p31, %s32, %s33
    %p37 = pneg %p31
    %p38 = scmp.eq.s32.totalorder %s8, 1
    %p39 = por %p37, %p38
    %p40 = scmp.ne.s32.totalorder %s32, %s35
    %p41 = scmp.eq.s32.totalorder %s8, 0
    %p42 = por %p40, %p41
    %p43 = scmp.ne.s32.totalorder %s32, %s35
    %p44 = scmp.eq.s32.totalorder %s13, 1
    %p45 = por %p43, %p44
    %p46 = scmp.ne.s32.totalorder %s35, %s36
    %p47 = scmp.eq.s32.totalorder %s13, 0
    %p48 = por %p46, %p47
    %p49 = scmp.ne.s32.totalorder %s35, %s36
    %p50 = scmp.eq.s32.totalorder %s14, 1
    %p51 = por %p49, %p50
    %p53 = scmp.ne.s32.totalorder %s36, %s52
    %p54 = scmp.eq.s32.totalorder %s14, 0
    %p55 = por %p53, %p54
    %s56 = sadd.s32 %s15, %s16
    %s57 = sadd.s32 %s27, %s23
    %s58 = ssub.s32 %s56, %s57
    %p59 = scmp.eq.s32.totalorder %s58, 0
    %s61 = sadd.s32 %s60, 1
    %s62 = scalar_select %p59, %s60, %s61
    %p65 = pneg %p59
    %p66 = scmp.eq.s32.totalorder %s8, 1
    %p67 = por %p65, %p66
    %p68 = scmp.ne.s32.totalorder %s60, %s63
    %p69 = scmp.eq.s32.totalorder %s8, 0
    %p70 = por %p68, %p69
    %p71 = scmp.ne.s32.totalorder %s60, %s63
    %p72 = scmp.eq.s32.totalorder %s13, 1
    %p73 = por %p71, %p72
    %p74 = scmp.ne.s32.totalorder %s63, %s64
    %p75 = scmp.eq.s32.totalorder %s13, 0
    %p76 = por %p74, %p75
    %p77 = scmp.ne.s32.totalorder %s63, %s64
    %p78 = scmp.eq.s32.totalorder %s14, 1
    %p79 = por %p77, %p78
    %p81 = scmp.ne.s32.totalorder %s64, %s80
    %p82 = scmp.eq.s32.totalorder %s14, 0
    %p83 = por %p81, %p82
    %s84 = ssub.s32 %s15, %s27
    %p85 = scmp.eq.s32.totalorder %s84, 0
    %s87 = sadd.s32 %s86, 1
    %s88 = scalar_select %p85, %s86, %s87
    %p91 = pneg %p85
    %p92 = scmp.eq.s32.totalorder %s8, 1
    %p93 = por %p91, %p92
    %p94 = scmp.ne.s32.totalorder %s86, %s89
    %p95 = scmp.eq.s32.totalorder %s8, 0
    %p96 = por %p94, %p95
    %p97 = scmp.ne.s32.totalorder %s86, %s89
    %p98 = scmp.eq.s32.totalorder %s13, 1
    %p99 = por %p97, %p98
    %p100 = scmp.ne.s32.totalorder %s89, %s90
    %p101 = scmp.eq.s32.totalorder %s13, 0
    %p102 = por %p100, %p101
    %p103 = scmp.ne.s32.totalorder %s89, %s90
    %p104 = scmp.eq.s32.totalorder %s14, 1
    %p105 = por %p103, %p104
    %p107 = scmp.ne.s32.totalorder %s90, %s106
    %p108 = scmp.eq.s32.totalorder %s14, 0
    %p109 = por %p107, %p108
    %p110 = scmp.le.s32.totalorder 1, %s8
    %p111 = scmp.lt.s32.totalorder %s8, 3
    %p112 = pnand %p110, %p111
    %p113 = pneg %p112
    // Predicated region
    $region9: #{bce_blur_with_logits_loss.1} parent=5 // pred_check
      _
    $region10: #{bce_blur_with_logits_loss.1} parent=5 // pred_check_branch
      %115 = sbr.rel (%p112) target = $region12
    $region11: #{bce_blur_with_logits_loss.1} parent=5 // pred_region
      %s116 = ssub.s32 %s8, 1
    $region12: #{bce_blur_with_logits_loss.1} parent=5 // pred_fallthru
      _
    %p117 = scmp.lt.s32.totalorder %s8, 2
    // Predicated region
    $region13: #{bce_blur_with_logits_loss.1} parent=5 // pred_check
      %p118 = pneg %p117
    $region14: #{bce_blur_with_logits_loss.1} parent=5 // pred_check_branch
      %120 = sbr.rel (%p118) target = $region16
    $region15: #{bce_blur_with_logits_loss.1} parent=5 // pred_region
      // Predicated region
      $region17: #{bce_blur_with_logits_loss.1} parent=15 // pred_check
        %p121 = pneg %p42
      $region18: #{bce_blur_with_logits_loss.1} parent=15 // pred_check_branch
        %123 = sbr.rel (%p121) target = $region20
      $region19: #{bce_blur_with_logits_loss.1} parent=15 // pred_region
        %s124 = sadd.s32 %s15, %s16
        %p125 = scmp.lt.s32.totalorder %s124, 1
        %s126 = scalar_select %p125, %s124, 1
        %s127 = smul.addr %s126, 8
        %s128 = scalar_lea.vmem %s0, %s127
        %s129 = sadd.s32 %s15, %s16
      $region20: #{bce_blur_with_logits_loss.1} parent=15 // pred_fallthru
        _
      // Predicated region
      $region21: #{bce_blur_with_logits_loss.1} parent=15 // pred_check
        %p130 = pneg %p70
      $region22: #{bce_blur_with_logits_loss.1} parent=15 // pred_check_branch
        %132 = sbr.rel (%p130) target = $region24
      $region23: #{bce_blur_with_logits_loss.1} parent=15 // pred_region
        %s133 = sadd.s32 %s15, %s16
        %p134 = scmp.lt.s32.totalorder %s133, 1
        %s135 = scalar_select %p134, %s133, 1
        %s136 = smul.addr %s135, 8
        %s137 = scalar_lea.vmem %s1, %s136
        %s138 = sadd.s32 %s15, %s16
      $region24: #{bce_blur_with_logits_loss.1} parent=15 // pred_fallthru
        _
    $region16: #{bce_blur_with_logits_loss.1} parent=5 // pred_fallthru
      _
    %p139 = scmp.le.s32.totalorder 1, %s8
    %p140 = scmp.lt.s32.totalorder %s8, 3
    %p141 = pnand %p139, %p140
    %p142 = pneg %p141
    // Predicated region
    $region25: #{bce_blur_with_logits_loss.1} parent=5 // pred_check
      _
    $region26: #{bce_blur_with_logits_loss.1} parent=5 // pred_check_branch
      %144 = sbr.rel (%p141) target = $region28
    $region27: #{bce_blur_with_logits_loss.1} parent=5 // pred_region
      %s145 = ssub.s32 %s8, 1
      %s146 = sadd.s32 %s17, %s18
      %p147 = scmp.lt.s32.totalorder %s146, 1
      %s148 = scalar_select %p147, %s146, 1
      %s149 = smul.addr %s148, 8
      %s150 = scalar_lea.vmem %s0, %s149
      %p151 = pneg %p48
      %p152 = pneg %p45
      %s153 = sadd.s32 %s17, %s18
      %p154 = scmp.lt.s32.totalorder %s153, 1
      %s155 = scalar_select %p154, %s153, 1
      %s156 = smul.addr %s155, 8
      %s157 = scalar_lea.vmem %s1, %s156
      %p158 = pneg %p76
      %p159 = pneg %p73
      %p160 = pneg %p102
      %p161 = pneg %p99
      %p162 = scmp.lt.s32.totalorder %s17, 1
      %s163 = scalar_select %p162, %s17, 1
      %s164 = smul.addr %s163, 8
      %s165 = scalar_lea.vmem %s2, %s164
      %s166 = sadd.s32 %s17, %s18
      %p167 = scmp.lt.s32.totalorder %s166, 1
      %s168 = scalar_select %p167, %s166, 1
      %s169 = smul.addr %s168, 8
      %s170 = scalar_lea.vmem %s0, %s169
      %s171 = sadd.s32 %s17, %s18
      %s172 = sadd.s32 %s17, %s18
      %p173 = scmp.lt.s32.totalorder %s172, 1
      %s174 = scalar_select %p173, %s172, 1
      %s175 = smul.addr %s174, 8
      %s176 = scalar_lea.vmem %s1, %s175
      %s177 = sadd.s32 %s17, %s18
      %p178 = scmp.lt.s32.totalorder %s17, 1
      %s179 = scalar_select %p178, %s17, 1
      %s180 = smul.addr %s179, 8
      %s181 = scalar_lea.vmem %s2, %s180
      %p182 = scmp.eq.s32.totalorder %s18, 0
      // Predicated region
      $region29: #{bce_blur_with_logits_loss.1} parent=27 // pred_check
        %p183 = pneg %p182
      $region30: #{bce_blur_with_logits_loss.1} parent=27 // pred_check_branch
        %185 = sbr.rel (%p183) target = $region32
      $region31: #{bce_blur_with_logits_loss.1} parent=27 // pred_region
        %186 = vst [vmem:[%s181] sm:$0xff] 0.0
      $region32: #{bce_blur_with_logits_loss.1} parent=27 // pred_fallthru
        _
      %v187 = vld [vmem:[%s170] sm:$0xff]
      %v188 = vld [vmem:[%s176] sm:$0xff]
      %v189 = vand.u32 2147483647, %v187
      %v190 = vsub.f32 0.0, %v189
      %v191 = vmul.f32 %v190, 1.442695
      %v192 = vpow.pop %v191
      %v193 = vadd.f32 %v192, 1.0
      %v194 = vmax.f32 %v187, 0.0
      %v195 = vmul.f32 %v187, %v188
      %v196 = vsub.f32 %v194, %v195
      %v197 = vlog2.pop %v193
      %v198 = vmul.f32 %v197, 0.6931472
      %v199 = vadd.f32 %v196, %v198
      %vm200 = vcmp.ge.f32.partialorder %v187, 0.0
      %v201 = vsel %vm200, 1.0, %v192
      %v202 = vrcp.pop %v193
      %v203 = vmul.f32 %v193, %v202
      %v204 = vsub.f32 1.0, %v203
      %v205 = vmul.f32 %v202, %v204
      %v206 = vadd.f32 %v202, %v205
      %vm207 = vweird.f32 %v193
      %vm208 = vweird.f32 %v202
      %vm209 = vmor %vm207, %vm208
      %v210 = vsel %vm209, %v202, %v206
      %v211 = vand.u32 2147483647, %v193
      %vm212 = vcmp.eq.f32.partialorder %v211, 8.507059e+37
      %v213 = vand.u32 %v193, 2147483648
      %v214 = vor.u32 1.1754944e-38, %v213
      %v215 = vsel %vm212, %v214, %v210
      %v216 = vmul.f32 %v201, %v215
      %v217 = vsub.f32 %v216, %v188
      %v218 = vsub.f32 %v217, 1.0
      %v219 = vmul.f32 %v218, 19.96008
      %v220 = vmul.f32 %v219, 1.442695
      %v221 = vpow.pop %v220
      %v222 = vsub.f32 1.0, %v221
      %v223 = vmul.f32 %v199, %v222
      %v224 = vld [vmem:[%s181] sm:$0xff]
      %v225 = vadd.f32 %v223, 0.0
      %v226 = vadd.f32 %v224, %v225
      %227 = vst [vmem:[%s181] sm:$0xff] %v226
      %p228 = scmp.lt.s32.totalorder %s17, 1
      %s229 = scalar_select %p228, %s17, 1
      %s230 = smul.addr %s229, 8
      %s231 = scalar_lea.vmem %s2, %s230
      // Predicated region
      $region33: #{bce_blur_with_logits_loss.1} parent=27 // pred_check
        %p232 = pneg %p99
      $region34: #{bce_blur_with_logits_loss.1} parent=27 // pred_check_branch
        %234 = sbr.rel (%p232) target = $region36
      $region35: #{bce_blur_with_logits_loss.1} parent=27 // pred_region
        _
      $region36: #{bce_blur_with_logits_loss.1} parent=27 // pred_fallthru
        _
    $region28: #{bce_blur_with_logits_loss.1} parent=5 // pred_fallthru
      _
    %p235 = scmp.le.s32.totalorder 2, %s8
    // Predicated region
    $region37: #{bce_blur_with_logits_loss.1} parent=5 // pred_check
      %p236 = pneg %p235
    $region38: #{bce_blur_with_logits_loss.1} parent=5 // pred_check_branch
      %238 = sbr.rel (%p236) target = $region40
    $region39: #{bce_blur_with_logits_loss.1} parent=5 // pred_region
      %s239 = ssub.s32 %s8, 2
      // Predicated region
      $region41: #{bce_blur_with_logits_loss.1} parent=39 // pred_check
        %p240 = pneg %p105
      $region42: #{bce_blur_with_logits_loss.1} parent=39 // pred_check_branch
        %242 = sbr.rel (%p240) target = $region44
      $region43: #{bce_blur_with_logits_loss.1} parent=39 // pred_region
        %p243 = scmp.lt.s32.totalorder %s19, 1
        %s244 = scalar_select %p243, %s19, 1
        %s245 = smul.addr %s244, 8
        %s246 = scalar_lea.vmem %s2, %s245
      $region44: #{bce_blur_with_logits_loss.1} parent=39 // pred_fallthru
        _
    $region40: #{bce_blur_with_logits_loss.1} parent=5 // pred_fallthru
      _
  $region6: #{bce_blur_with_logits_loss.1} parent=0 // loop_footer
    %s12 = sadd.s32 1, %s8
  $region7: #{bce_blur_with_logits_loss.1} parent=0 // loop_footer_branch
    %7 = sbr.rel target = $region3
  $region8: #{bce_blur_with_logits_loss.1} parent=0 // loop_exit
    _

</llo_original>
